<compile_context>
chip_gen: v7x
topology: tpu7x:2x2x1
jax: 0.10.0
libtpu: 0.0.40
codegen_flags: <defaults>
</compile_context>

<pallas_src>
import math

import jax
import jax.numpy as jnp
from jax.experimental import pallas as pl
from jax.experimental.pallas import tpu as pltpu


def _attention_kernel(x_ref, wq_ref, wk_ref, wv_ref, wp_ref, bias_ref,
                      o_ref, acc_ref):
    """One (batch, head) grid step.

    x_ref   : (1, N, C)  bf16 input block (resident across the head axis)
    wq_ref  : (1, C, D)  per-head Q weight (softmax scale pre-folded)
    wk_ref  : (1, C, D)  per-head K weight
    wv_ref  : (1, C, D)  per-head V weight
    wp_ref  : (1, D, C)  per-head slice of the output projection
    bias_ref: (1, C)     f32 output-projection bias
    o_ref   : (1, N, C)  output block (written on the last head)
    acc_ref : (N, C)     f32 VMEM accumulator across heads
    """
    h = pl.program_id(1)
    last_h = pl.num_programs(1) - 1

    @pl.when(h == 0)
    def _init():
        acc_ref[...] = jnp.zeros_like(acc_ref)

    x = x_ref[0]                                                     # (N, C) bf16

    # Per-head projections: bf16 MXU inputs, f32 accumulation, full-width
    # contraction over C.
    q = jnp.dot(x, wq_ref[0], preferred_element_type=jnp.float32)    # (N, D)
    k = jnp.dot(x, wk_ref[0], preferred_element_type=jnp.float32)    # (N, D)
    v = jnp.dot(x, wv_ref[0], preferred_element_type=jnp.float32)    # (N, D)

    # Scores = q @ k^T without an explicit transpose: contract D of both.
    s = jax.lax.dot_general(
        q.astype(x.dtype), k.astype(x.dtype),
        dimension_numbers=(((1,), (1,)), ((), ())),
        preferred_element_type=jnp.float32)                          # (N, N) f32

    # Numerically-stable softmax in f32; divide on the EUP (approx reciprocal).
    s = s - jnp.max(s, axis=-1, keepdims=True)
    p = jnp.exp(s)
    p = p * pl.reciprocal(jnp.sum(p, axis=-1, keepdims=True), approx=True)

    # Head output and its output-projection contribution, accumulated directly
    # into the lane-dense (N, C) scratch (no concat, no misaligned stores).
    o_h = jnp.dot(p.astype(x.dtype), v.astype(x.dtype),
                  preferred_element_type=jnp.float32)                # (N, D)
    acc_ref[...] += jnp.dot(o_h.astype(x.dtype), wp_ref[0],
                            preferred_element_type=jnp.float32)      # (N, C)

    @pl.when(h == last_h)
    def _finalize():
        o_ref[0] = (acc_ref[...] + bias_ref[...]).astype(o_ref.dtype)


def attention_forward(x, w_qkv, w_proj, b_proj, *, num_heads,
                      compute_dtype=jnp.bfloat16):
    """x: (B, N, C); w_qkv: (C, 3C) [already (in, out)]; w_proj: (C, C); b_proj: (C,)."""
    B, N, C = x.shape
    assert C % num_heads == 0
    D = C // num_heads
    scale = D ** (-0.5)

    # Head-major weight layout, prepared once outside the kernel (weights only).
    # Softmax scale folded into Wq in f32 (exact: qkv projection has no bias).
    w_q = (w_qkv[:, 0 * C:1 * C] * scale).reshape(C, num_heads, D)
    w_k = w_qkv[:, 1 * C:2 * C].reshape(C, num_heads, D)
    w_v = w_qkv[:, 2 * C:3 * C].reshape(C, num_heads, D)
    w_q = jnp.transpose(w_q, (1, 0, 2)).astype(compute_dtype)        # (H, C, D)
    w_k = jnp.transpose(w_k, (1, 0, 2)).astype(compute_dtype)        # (H, C, D)
    w_v = jnp.transpose(w_v, (1, 0, 2)).astype(compute_dtype)        # (H, C, D)
    w_p = w_proj.reshape(num_heads, D, C).astype(compute_dtype)      # (H, D, C)
    bias = b_proj.reshape(1, C).astype(jnp.float32)
    x_c = x.astype(compute_dtype)

    # Advisory cost estimate for the XLA scheduler.
    flops = 2 * B * (4 * N * C * C + 2 * N * N * C)
    transcendentals = B * num_heads * N * N
    bytes_accessed = (
        B * N * C * jnp.dtype(compute_dtype).itemsize                 # x
        + (3 * C * C + C * C) * jnp.dtype(compute_dtype).itemsize     # weights
        + C * 4                                                       # bias
        + B * N * C * x.dtype.itemsize)                               # output

    return pl.pallas_call(
        _attention_kernel,
        out_shape=jax.ShapeDtypeStruct((B, N, C), x.dtype),
        grid_spec=pltpu.PrefetchScalarGridSpec(
            num_scalar_prefetch=0,
            grid=(B, num_heads),
            in_specs=[
                pl.BlockSpec((1, N, C), lambda b, h: (b, 0, 0)),   # x (resident over h)
                pl.BlockSpec((1, C, D), lambda b, h: (h, 0, 0)),   # w_q (streamed)
                pl.BlockSpec((1, C, D), lambda b, h: (h, 0, 0)),   # w_k (streamed)
                pl.BlockSpec((1, C, D), lambda b, h: (h, 0, 0)),   # w_v (streamed)
                pl.BlockSpec((1, D, C), lambda b, h: (h, 0, 0)),   # w_proj slice
                pl.BlockSpec((1, C), lambda b, h: (0, 0)),         # bias
            ],
            out_specs=pl.BlockSpec((1, N, C), lambda b, h: (b, 0, 0)),
            scratch_shapes=[pltpu.VMEM((N, C), jnp.float32)],
        ),
        compiler_params=pltpu.CompilerParams(
            dimension_semantics=("parallel", "arbitrary"),
            vmem_limit_bytes=32 * 1024 * 1024),
        cost_estimate=pl.CostEstimate(
            flops=flops,
            transcendentals=transcendentals,
            bytes_accessed=int(bytes_accessed)),
    )(x_c, w_q, w_k, w_v, w_p, bias)


def attention_reference(x, w_qkv, w_proj, b_proj, *, num_heads):
    """Pure-JAX reference matching the PyTorch module semantics."""
    B, N, C = x.shape
    D = C // num_heads
    scale = D ** (-0.5)
    qkv = x @ w_qkv                                        # (B, N, 3C)
    qkv = qkv.reshape(B, N, 3, num_heads, D).transpose(2, 0, 3, 1, 4)
    q, k, v = qkv[0], qkv[1], qkv[2]                       # (B, H, N, D)
    attn = (q @ jnp.swapaxes(k, -2, -1)) * scale           # (B, H, N, N)
    attn = jax.nn.softmax(attn, axis=-1)
    out = (attn @ v).transpose(0, 2, 1, 3).reshape(B, N, C)
    return out @ w_proj + b_proj


if __name__ == "__main__":
    # Small shapes consistent with the module: dim divisible by num_heads.
    B, N, C = 2, 8, 32
    num_heads = 4

    key = jax.random.PRNGKey(0)
    k_x, k_wqkv, k_wproj, k_bproj = jax.random.split(key, 4)

    x = jax.random.normal(k_x, (B, N, C), dtype=jnp.float32)

    # qkv: Linear(C, 3C, bias=False); proj: Linear(C, C) with bias. Stored (in, out).
    bound = 1.0 / math.sqrt(C)
    w_qkv = jax.random.uniform(k_wqkv, (C, 3 * C), jnp.float32, -bound, bound)
    w_proj = jax.random.uniform(k_wproj, (C, C), jnp.float32, -bound, bound)
    b_proj = jax.random.uniform(k_bproj, (C,), jnp.float32, -bound, bound)

    out = attention_forward(x, w_qkv, w_proj, b_proj, num_heads=num_heads)
    out = jax.block_until_ready(out)

    # Reference in f32 from the same bf16-rounded operands the kernel feeds the
    # MXU (the kernel accumulates in f32).
    def _r(a):
        return a.astype(jnp.bfloat16).astype(jnp.float32)

    ref = attention_reference(_r(x), _r(w_qkv), _r(w_proj), b_proj,
                              num_heads=num_heads)

    assert out.shape == (B, N, C)
    assert jnp.allclose(out, ref, atol=2e-2, rtol=2e-2), (
        "mismatch vs reference, max abs err = "
        + str(float(jnp.max(jnp.abs(out - ref)))))

    # TODO(synk): attn_drop / proj_drop (nn.Dropout, p=0.0 default) are identity
    # at inference; training-mode dropout is not implemented.
    print("KERNEL_OK")
</pallas_src>

<mosaic_0001>
module attributes {stable_mosaic.version = 11 : i64} {
  func.func @_attention_kernel(%arg0: i32, %arg1: i32, %arg2: memref<1x8x32xbf16, #tpu.memory_space<vmem>>, %arg3: memref<1x32x8xbf16, #tpu.memory_space<vmem>>, %arg4: memref<1x32x8xbf16, #tpu.memory_space<vmem>>, %arg5: memref<1x32x8xbf16, #tpu.memory_space<vmem>>, %arg6: memref<1x8x32xbf16, #tpu.memory_space<vmem>>, %arg7: memref<1x32xf32, #tpu.memory_space<vmem>>, %arg8: memref<1x8x32xf32, #tpu.memory_space<vmem>>, %arg9: memref<8x32xf32, #tpu.memory_space<vmem>>) attributes {dimension_semantics = [#tpu.dimension_semantics<parallel>, #tpu.dimension_semantics<arbitrary>], iteration_bounds = array<i64: 2, 4>, scalar_prefetch = 0 : i64, scratch_operands = 1 : i64, tpu.core_type = #tpu.core_type<tc>, window_params = [{transform_indices = @transform_0, window_bounds = array<i64: 1, 8, 32>}, {transform_indices = @transform_1, window_bounds = array<i64: 1, 32, 8>}, {transform_indices = @transform_2, window_bounds = array<i64: 1, 32, 8>}, {transform_indices = @transform_3, window_bounds = array<i64: 1, 32, 8>}, {transform_indices = @transform_4, window_bounds = array<i64: 1, 8, 32>}, {pipeline_mode = #tpu.pipeline_mode<synchronous>, transform_indices = @transform_5, window_bounds = array<i64: 1, 32>}, {transform_indices = @transform_6, window_bounds = array<i64: 1, 8, 32>}]} {
    %c0_i32 = arith.constant 0 : i32
    %0 = arith.cmpi eq, %arg1, %c0_i32 : i32
    %1 = arith.extui %0 : i1 to i32
    %c0_i32_0 = arith.constant 0 : i32
    %2 = arith.cmpi ne, %1, %c0_i32_0 : i32
    scf.if %2 {
      %cst_27 = arith.constant 0.000000e+00 : f32
      %40 = vector.broadcast %cst_27 : f32 to vector<8x32xf32>
      %c0_28 = arith.constant 0 : index
      %c0_29 = arith.constant 0 : index
      %41 = vector.load %arg9[%c0_28, %c0_29] : memref<8x32xf32, #tpu.memory_space<vmem>>, vector<8x32xf32>
      tpu.vector_store %arg9[%c0_28, %c0_29], %40 {strides = array<i32>} : memref<8x32xf32, #tpu.memory_space<vmem>>, vector<8x32xf32>,
    } else {
    }
    %c0 = arith.constant 0 : index
    %c0_1 = arith.constant 0 : index
    %c0_2 = arith.constant 0 : index
    %3 = vector.load %arg2[%c0, %c0_1, %c0_2] : memref<1x8x32xbf16, #tpu.memory_space<vmem>>, vector<1x8x32xbf16>
    %4 = vector.shape_cast %3 : vector<1x8x32xbf16> to vector<8x32xbf16>
    %c0_3 = arith.constant 0 : index
    %c0_4 = arith.constant 0 : index
    %c0_5 = arith.constant 0 : index
    %5 = vector.load %arg3[%c0_3, %c0_4, %c0_5] : memref<1x32x8xbf16, #tpu.memory_space<vmem>>, vector<1x32x8xbf16>
    %6 = vector.shape_cast %5 : vector<1x32x8xbf16> to vector<32x8xbf16>
    %cst = arith.constant dense<0.000000e+00> : vector<8x8xf32>
    %7 = tpu.matmul %4, %6, %cst {dimension_numbers = #tpu.dot_dimension_numbers<[1], [0], [0], [1], [0, 0, 1, 1], [], []>} : vector<8x32xbf16>, vector<32x8xbf16>, vector<8x8xf32> -> vector<8x8xf32>
    %c0_6 = arith.constant 0 : index
    %c0_7 = arith.constant 0 : index
    %c0_8 = arith.constant 0 : index
    %8 = vector.load %arg4[%c0_6, %c0_7, %c0_8] : memref<1x32x8xbf16, #tpu.memory_space<vmem>>, vector<1x32x8xbf16>
    %9 = vector.shape_cast %8 : vector<1x32x8xbf16> to vector<32x8xbf16>
    %cst_9 = arith.constant dense<0.000000e+00> : vector<8x8xf32>
    %10 = tpu.matmul %4, %9, %cst_9 {dimension_numbers = #tpu.dot_dimension_numbers<[1], [0], [0], [1], [0, 0, 1, 1], [], []>} : vector<8x32xbf16>, vector<32x8xbf16>, vector<8x8xf32> -> vector<8x8xf32>
    %c0_10 = arith.constant 0 : index
    %c0_11 = arith.constant 0 : index
    %c0_12 = arith.constant 0 : index
    %11 = vector.load %arg5[%c0_10, %c0_11, %c0_12] : memref<1x32x8xbf16, #tpu.memory_space<vmem>>, vector<1x32x8xbf16>
    %12 = vector.shape_cast %11 : vector<1x32x8xbf16> to vector<32x8xbf16>
    %cst_13 = arith.constant dense<0.000000e+00> : vector<8x8xf32>
    %13 = tpu.matmul %4, %12, %cst_13 {dimension_numbers = #tpu.dot_dimension_numbers<[1], [0], [0], [1], [0, 0, 1, 1], [], []>} : vector<8x32xbf16>, vector<32x8xbf16>, vector<8x8xf32> -> vector<8x8xf32>
    %14 = arith.truncf %7 : vector<8x8xf32> to vector<8x8xbf16>
    %15 = arith.truncf %10 : vector<8x8xf32> to vector<8x8xbf16>
    %cst_14 = arith.constant dense<0.000000e+00> : vector<8x8xf32>
    %16 = tpu.matmul %14, %15, %cst_14 {dimension_numbers = #tpu.dot_dimension_numbers<[1], [1], [0], [0], [0, 0, 1, 0], [], []>} : vector<8x8xbf16>, vector<8x8xbf16>, vector<8x8xf32> -> vector<8x8xf32>
    %cst_15 = arith.constant dense<0xFF800000> : vector<8xf32>
    %17 = vector.multi_reduction <maximumf>, %16, %cst_15 [1] : vector<8x8xf32> to vector<8xf32>
    %18 = vector.shape_cast %17 : vector<8xf32> to vector<8x1xf32>
    %19 = vector.broadcast %18 : vector<8x1xf32> to vector<8x8xf32>
    %20 = arith.subf %16, %19 : vector<8x8xf32>
    %21 = math.exp %20 : vector<8x8xf32>
    %cst_16 = arith.constant dense<0.000000e+00> : vector<8xf32>
    %22 = vector.multi_reduction <add>, %21, %cst_16 [1] : vector<8x8xf32> to vector<8xf32>
    %23 = vector.shape_cast %22 : vector<8xf32> to vector<8x1xf32>
    %24 = tpu.reciprocal %23 {approx = true} : vector<8x1xf32> -> vector<8x1xf32>
    %25 = vector.broadcast %24 : vector<8x1xf32> to vector<8x8xf32>
    %26 = arith.mulf %21, %25 : vector<8x8xf32>
    %27 = arith.truncf %26 : vector<8x8xf32> to vector<8x8xbf16>
    %28 = arith.truncf %13 : vector<8x8xf32> to vector<8x8xbf16>
    %cst_17 = arith.constant dense<0.000000e+00> : vector<8x8xf32>
    %29 = tpu.matmul %27, %28, %cst_17 {dimension_numbers = #tpu.dot_dimension_numbers<[1], [0], [0], [1], [0, 0, 1, 1], [], []>} : vector<8x8xbf16>, vector<8x8xbf16>, vector<8x8xf32> -> vector<8x8xf32>
    %c0_18 = arith.constant 0 : index
    %c0_19 = arith.constant 0 : index
    %30 = vector.load %arg9[%c0_18, %c0_19] : memref<8x32xf32, #tpu.memory_space<vmem>>, vector<8x32xf32>
    %31 = arith.truncf %29 : vector<8x8xf32> to vector<8x8xbf16>
    %c0_20 = arith.constant 0 : index
    %c0_21 = arith.constant 0 : index
    %c0_22 = arith.constant 0 : index
    %32 = vector.load %arg6[%c0_20, %c0_21, %c0_22] : memref<1x8x32xbf16, #tpu.memory_space<vmem>>, vector<1x8x32xbf16>
    %33 = vector.shape_cast %32 : vector<1x8x32xbf16> to vector<8x32xbf16>
    %cst_23 = arith.constant dense<0.000000e+00> : vector<8x32xf32>
    %34 = tpu.matmul %31, %33, %cst_23 {dimension_numbers = #tpu.dot_dimension_numbers<[1], [0], [0], [1], [0, 0, 1, 1], [], []>} : vector<8x8xbf16>, vector<8x32xbf16>, vector<8x32xf32> -> vector<8x32xf32>
    %35 = arith.addf %30, %34 : vector<8x32xf32>
    %c0_24 = arith.constant 0 : index
    %c0_25 = arith.constant 0 : index
    %36 = vector.load %arg9[%c0_24, %c0_25] : memref<8x32xf32, #tpu.memory_space<vmem>>, vector<8x32xf32>
    tpu.vector_store %arg9[%c0_24, %c0_25], %35 {strides = array<i32>} : memref<8x32xf32, #tpu.memory_space<vmem>>, vector<8x32xf32>,
    %c3_i32 = arith.constant 3 : i32
    %37 = arith.cmpi eq, %arg1, %c3_i32 : i32
    %38 = arith.extui %37 : i1 to i32
    %c0_i32_26 = arith.constant 0 : i32
    %39 = arith.cmpi ne, %38, %c0_i32_26 : i32
    scf.if %39 {
      %c0_27 = arith.constant 0 : index
      %c0_28 = arith.constant 0 : index
      %40 = vector.load %arg9[%c0_27, %c0_28] : memref<8x32xf32, #tpu.memory_space<vmem>>, vector<8x32xf32>
      %c0_29 = arith.constant 0 : index
      %c0_30 = arith.constant 0 : index
      %41 = vector.load %arg7[%c0_29, %c0_30] : memref<1x32xf32, #tpu.memory_space<vmem>>, vector<1x32xf32>
      %42 = vector.broadcast %41 : vector<1x32xf32> to vector<8x32xf32>
      %43 = arith.addf %40, %42 : vector<8x32xf32>
      %c0_31 = arith.constant 0 : index
      %c0_32 = arith.constant 0 : index
      %c0_33 = arith.constant 0 : index
      %44 = vector.load %arg8[%c0_31, %c0_32, %c0_33] : memref<1x8x32xf32, #tpu.memory_space<vmem>>, vector<1x8x32xf32>
      %45 = vector.shape_cast %44 : vector<1x8x32xf32> to vector<8x32xf32>
      %46 = vector.shape_cast %43 : vector<8x32xf32> to vector<1x8x32xf32>
      tpu.vector_store %arg8[%c0_31, %c0_32, %c0_33], %46 {strides = array<i32>} : memref<1x8x32xf32, #tpu.memory_space<vmem>>, vector<1x8x32xf32>,
    } else {
    }
    return
  }
  func.func @transform_0(%arg0: i32, %arg1: i32) -> (i32, i32, i32) {
    %c0_i32 = arith.constant 0 : i32
    %c0_i32_0 = arith.constant 0 : i32
    %c0_i32_1 = arith.constant 0 : i32
    return %arg0, %c0_i32, %c0_i32_0 : i32, i32, i32
  }
  func.func @transform_1(%arg0: i32, %arg1: i32) -> (i32, i32, i32) {
    %c0_i32 = arith.constant 0 : i32
    %c0_i32_0 = arith.constant 0 : i32
    %c0_i32_1 = arith.constant 0 : i32
    return %arg1, %c0_i32, %c0_i32_0 : i32, i32, i32
  }
  func.func @transform_2(%arg0: i32, %arg1: i32) -> (i32, i32, i32) {
    %c0_i32 = arith.constant 0 : i32
    %c0_i32_0 = arith.constant 0 : i32
    %c0_i32_1 = arith.constant 0 : i32
    return %arg1, %c0_i32, %c0_i32_0 : i32, i32, i32
  }
  func.func @transform_3(%arg0: i32, %arg1: i32) -> (i32, i32, i32) {
    %c0_i32 = arith.constant 0 : i32
    %c0_i32_0 = arith.constant 0 : i32
    %c0_i32_1 = arith.constant 0 : i32
    return %arg1, %c0_i32, %c0_i32_0 : i32, i32, i32
  }
  func.func @transform_4(%arg0: i32, %arg1: i32) -> (i32, i32, i32) {
    %c0_i32 = arith.constant 0 : i32
    %c0_i32_0 = arith.constant 0 : i32
    %c0_i32_1 = arith.constant 0 : i32
    return %arg1, %c0_i32, %c0_i32_0 : i32, i32, i32
  }
  func.func @transform_5(%arg0: i32, %arg1: i32) -> (i32, i32) {
    %c0_i32 = arith.constant 0 : i32
    %c0_i32_0 = arith.constant 0 : i32
    %c0_i32_1 = arith.constant 0 : i32
    return %c0_i32, %c0_i32_0 : i32, i32
  }
  func.func @transform_6(%arg0: i32, %arg1: i32) -> (i32, i32, i32) {
    %c0_i32 = arith.constant 0 : i32
    %c0_i32_0 = arith.constant 0 : i32
    %c0_i32_1 = arith.constant 0 : i32
    return %arg0, %c0_i32, %c0_i32_0 : i32, i32, i32
  }
}

</mosaic_0001>

<llo_original>
// kernel: tpu_custom_call.1
$region0: #{tpu_custom_call.1}
  #allocation0 [shape = 'u32[]', space=smem, size = 0x4, offset = 0x4, fixed_abs, tag = 'smem constant byte address 0x4 - core index']
  #allocation1 [shape = 'u32[144,128]{1,0:T(1,128)}', space=vmem, size = 0x12000, scoped, tag = 'internal scratch']
  #allocation2 [shape = 'f32[8,32]{1,0:T(8,128)}', space=vmem, size = 0x1000, scoped, tag = 'scratch operand']
  %s0 = inlined_call_operand.vmem [shape: bf16[2,8,32], index: 0, kind: input, shape index: {}]
  %s1 = inlined_call_operand.vmem [shape: bf16[4,32,8], index: 1, kind: input, shape index: {}]
  %s2 = inlined_call_operand.vmem [shape: bf16[4,32,8], index: 2, kind: input, shape index: {}]
  %s3 = inlined_call_operand.vmem [shape: bf16[4,32,8], index: 3, kind: input, shape index: {}]
  %s4 = inlined_call_operand.vmem [shape: bf16[4,8,32], index: 4, kind: input, shape index: {}]
  %s5 = inlined_call_operand.vmem [shape: f32[1,32], index: 5, kind: input, shape index: {}]
  %s6 = inlined_call_operand.hbm [shape: f32[2,8,32], index: 6, kind: output, shape index: {}]
  %s7 = sld [smem:[#allocation0]]
  $region65: #{tpu_custom_call.1} parent=0
    _
  %s9 = ssub.s32 1, %s7
  %s10 = scalar_select 0, %s9, %s7
  $region1: #{tpu_custom_call.1} parent=0
    #allocation3 [shape = 'u8[8192]{0}', space=vmem, size = 0x2000, scoped, tag = 'output window, operand 0']
    #allocation4 [shape = 's32[2]{0}', space=sflag, size = 0x8, scoped, tag = 'scoped memory for tpu_custom_call.1']
    %11 = vsyncpa [#allocation4], 0
    %s12 = scalar_lea.sflag [#allocation4], 1
    %13 = vsyncpa %s12, 0
    loop: start=0, step=1, limit=10
    $region2: #{tpu_custom_call.1} parent=1 // loop_pre_header
      _
    $region3: #{tpu_custom_call.1} parent=1 // loop_header
      %s15 = sphi 0, %s19
      %p16 = scmp.ge.s32.totalorder %s15, 10
      %s22 = sphi 0, %s34
      %s23 = sphi 0, %s30
      %s24 = sphi 0, %s22
      %s25 = sphi 0, %s23
      %s26 = sphi 0, %s24
      %s27 = sphi 0, %s25
      %s37 = sphi 0, %s39
      %s40 = sphi 0, %s37
      %s41 = sphi 0, %s40
      %s57 = sphi 0, %s41
      %s63 = sphi 0, %s65
      %s66 = sphi 0, %s63
      %s67 = sphi 0, %s66
      %s83 = sphi 0, %s67
      %s89 = sphi 0, %s91
      %s92 = sphi 0, %s89
      %s93 = sphi 0, %s92
      %s109 = sphi 0, %s93
      %s115 = sphi 0, %s117
      %s118 = sphi 0, %s115
      %s119 = sphi 0, %s118
      %s135 = sphi 0, %s119
      %s141 = sphi 0, %s143
      %s144 = sphi 0, %s141
      %s145 = sphi 0, %s144
      %s161 = sphi 0, %s145
      %s165 = sphi 0, %s165
      %s167 = sphi 0, %s165
      %s168 = sphi 0, %s167
      %s182 = sphi 0, %s168
      %s188 = sphi 0, %s190
      %s191 = sphi 0, %s188
      %s192 = sphi 0, %s191
      %s208 = sphi 0, %s192
    $region4: #{tpu_custom_call.1} parent=1 // loop_header_branch
      %18 = sbr.rel (%p16) target = $region8
    $region5: #{tpu_custom_call.1} parent=1 // loop_body
      %s20 = ssub.s32 %s15, 1
      %s21 = ssub.s32 %s15, 2
      %s28 = sadd.s32 1, %s23
      %p29 = scmp.ge.s32.totalorder %s28, 4
      %s30 = scalar_select %p29, 0, %s28
      %s31 = sadd.s32 1, %s22
      %s32 = scalar_select %p29, %s31, %s22
      %p33 = scmp.ge.s32.totalorder %s32, 2
      %s34 = scalar_select %p33, 0, %s32
      %s35 = ssub.s32 %s22, %s34
      %p36 = scmp.eq.s32.totalorder %s35, 0
      %s38 = sadd.s32 %s37, 1
      %s39 = scalar_select %p36, %s37, %s38
      %p42 = pneg %p36
      %p43 = scmp.eq.s32.totalorder %s15, 7
      %p44 = por %p42, %p43
      %p45 = scmp.ne.s32.totalorder %s37, %s40
      %p46 = scmp.eq.s32.totalorder %s15, 0
      %p47 = por %p45, %p46
      %p48 = scmp.ne.s32.totalorder %s37, %s40
      %p49 = scmp.eq.s32.totalorder %s20, 7
      %p50 = por %p48, %p49
      %p51 = scmp.ne.s32.totalorder %s40, %s41
      %p52 = scmp.eq.s32.totalorder %s20, 0
      %p53 = por %p51, %p52
      %p54 = scmp.ne.s32.totalorder %s40, %s41
      %p55 = scmp.eq.s32.totalorder %s21, 7
      %p56 = por %p54, %p55
      %p58 = scmp.ne.s32.totalorder %s41, %s57
      %p59 = scmp.eq.s32.totalorder %s21, 0
      %p60 = por %p58, %p59
      %s61 = ssub.s32 %s23, %s30
      %p62 = scmp.eq.s32.totalorder %s61, 0
      %s64 = sadd.s32 %s63, 1
      %s65 = scalar_select %p62, %s63, %s64
      %p68 = pneg %p62
      %p69 = scmp.eq.s32.totalorder %s15, 7
      %p70 = por %p68, %p69
      %p71 = scmp.ne.s32.totalorder %s63, %s66
      %p72 = scmp.eq.s32.totalorder %s15, 0
      %p73 = por %p71, %p72
      %p74 = scmp.ne.s32.totalorder %s63, %s66
      %p75 = scmp.eq.s32.totalorder %s20, 7
      %p76 = por %p74, %p75
      %p77 = scmp.ne.s32.totalorder %s66, %s67
      %p78 = scmp.eq.s32.totalorder %s20, 0
      %p79 = por %p77, %p78
      %p80 = scmp.ne.s32.totalorder %s66, %s67
      %p81 = scmp.eq.s32.totalorder %s21, 7
      %p82 = por %p80, %p81
      %p84 = scmp.ne.s32.totalorder %s67, %s83
      %p85 = scmp.eq.s32.totalorder %s21, 0
      %p86 = por %p84, %p85
      %s87 = ssub.s32 %s23, %s30
      %p88 = scmp.eq.s32.totalorder %s87, 0
      %s90 = sadd.s32 %s89, 1
      %s91 = scalar_select %p88, %s89, %s90
      %p94 = pneg %p88
      %p95 = scmp.eq.s32.totalorder %s15, 7
      %p96 = por %p94, %p95
      %p97 = scmp.ne.s32.totalorder %s89, %s92
      %p98 = scmp.eq.s32.totalorder %s15, 0
      %p99 = por %p97, %p98
      %p100 = scmp.ne.s32.totalorder %s89, %s92
      %p101 = scmp.eq.s32.totalorder %s20, 7
      %p102 = por %p100, %p101
      %p103 = scmp.ne.s32.totalorder %s92, %s93
      %p104 = scmp.eq.s32.totalorder %s20, 0
      %p105 = por %p103, %p104
      %p106 = scmp.ne.s32.totalorder %s92, %s93
      %p107 = scmp.eq.s32.totalorder %s21, 7
      %p108 = por %p106, %p107
      %p110 = scmp.ne.s32.totalorder %s93, %s109
      %p111 = scmp.eq.s32.totalorder %s21, 0
      %p112 = por %p110, %p111
      %s113 = ssub.s32 %s23, %s30
      %p114 = scmp.eq.s32.totalorder %s113, 0
      %s116 = sadd.s32 %s115, 1
      %s117 = scalar_select %p114, %s115, %s116
      %p120 = pneg %p114
      %p121 = scmp.eq.s32.totalorder %s15, 7
      %p122 = por %p120, %p121
      %p123 = scmp.ne.s32.totalorder %s115, %s118
      %p124 = scmp.eq.s32.totalorder %s15, 0
      %p125 = por %p123, %p124
      %p126 = scmp.ne.s32.totalorder %s115, %s118
      %p127 = scmp.eq.s32.totalorder %s20, 7
      %p128 = por %p126, %p127
      %p129 = scmp.ne.s32.totalorder %s118, %s119
      %p130 = scmp.eq.s32.totalorder %s20, 0
      %p131 = por %p129, %p130
      %p132 = scmp.ne.s32.totalorder %s118, %s119
      %p133 = scmp.eq.s32.totalorder %s21, 7
      %p134 = por %p132, %p133
      %p136 = scmp.ne.s32.totalorder %s119, %s135
      %p137 = scmp.eq.s32.totalorder %s21, 0
      %p138 = por %p136, %p137
      %s139 = ssub.s32 %s23, %s30
      %p140 = scmp.eq.s32.totalorder %s139, 0
      %s142 = sadd.s32 %s141, 1
      %s143 = scalar_select %p140, %s141, %s142
      %p146 = pneg %p140
      %p147 = scmp.eq.s32.totalorder %s15, 7
      %p148 = por %p146, %p147
      %p149 = scmp.ne.s32.totalorder %s141, %s144
      %p150 = scmp.eq.s32.totalorder %s15, 0
      %p151 = por %p149, %p150
      %p152 = scmp.ne.s32.totalorder %s141, %s144
      %p153 = scmp.eq.s32.totalorder %s20, 7
      %p154 = por %p152, %p153
      %p155 = scmp.ne.s32.totalorder %s144, %s145
      %p156 = scmp.eq.s32.totalorder %s20, 0
      %p157 = por %p155, %p156
      %p158 = scmp.ne.s32.totalorder %s144, %s145
      %p159 = scmp.eq.s32.totalorder %s21, 7
      %p160 = por %p158, %p159
      %p162 = scmp.ne.s32.totalorder %s145, %s161
      %p163 = scmp.eq.s32.totalorder %s21, 0
      %p164 = por %p162, %p163
      %s166 = sadd.s32 %s165, 1
      %p169 = scmp.eq.s32.totalorder %s15, 7
      %p170 = scmp.ne.s32.totalorder %s165, %s167
      %p171 = scmp.eq.s32.totalorder %s15, 0
      %p172 = por %p170, %p171
      %p173 = scmp.ne.s32.totalorder %s165, %s167
      %p174 = scmp.eq.s32.totalorder %s20, 7
      %p175 = por %p173, %p174
      %p176 = scmp.ne.s32.totalorder %s167, %s168
      %p177 = scmp.eq.s32.totalorder %s20, 0
      %p178 = por %p176, %p177
      %p179 = scmp.ne.s32.totalorder %s167, %s168
      %p180 = scmp.eq.s32.totalorder %s21, 7
      %p181 = por %p179, %p180
      %p183 = scmp.ne.s32.totalorder %s168, %s182
      %p184 = scmp.eq.s32.totalorder %s21, 0
      %p185 = por %p183, %p184
      %s186 = ssub.s32 %s22, %s34
      %p187 = scmp.eq.s32.totalorder %s186, 0
      %s189 = sadd.s32 %s188, 1
      %s190 = scalar_select %p187, %s188, %s189
      %p193 = pneg %p187
      %p194 = scmp.eq.s32.totalorder %s15, 7
      %p195 = por %p193, %p194
      %p196 = scmp.ne.s32.totalorder %s188, %s191
      %p197 = scmp.eq.s32.totalorder %s15, 0
      %p198 = por %p196, %p197
      %p199 = scmp.ne.s32.totalorder %s188, %s191
      %p200 = scmp.eq.s32.totalorder %s20, 7
      %p201 = por %p199, %p200
      %p202 = scmp.ne.s32.totalorder %s191, %s192
      %p203 = scmp.eq.s32.totalorder %s20, 0
      %p204 = por %p202, %p203
      %p205 = scmp.ne.s32.totalorder %s191, %s192
      %p206 = scmp.eq.s32.totalorder %s21, 7
      %p207 = por %p205, %p206
      %p209 = scmp.ne.s32.totalorder %s192, %s208
      %p210 = scmp.eq.s32.totalorder %s21, 0
      %p211 = por %p209, %p210
      %p212 = scmp.le.s32.totalorder 1, %s15
      %p213 = scmp.lt.s32.totalorder %s15, 9
      %p214 = pnand %p212, %p213
      %p215 = pneg %p214
      // Predicated region
      $region9: #{tpu_custom_call.1} parent=5 // pred_check
        _
      $region10: #{tpu_custom_call.1} parent=5 // pred_check_branch
        %217 = sbr.rel (%p214) target = $region12
      $region11: #{tpu_custom_call.1} parent=5 // pred_region
        %s218 = ssub.s32 %s15, 1
        // Predicated region
        $region13: #{tpu_custom_call.1} parent=11 // pred_check
          %p219 = pneg %p178
        $region14: #{tpu_custom_call.1} parent=11 // pred_check_branch
          %221 = sbr.rel (%p219) target = $region16
        $region15: #{tpu_custom_call.1} parent=11 // pred_region
          _
        $region16: #{tpu_custom_call.1} parent=11 // pred_fallthru
          _
      $region12: #{tpu_custom_call.1} parent=5 // pred_fallthru
        _
      %p222 = scmp.lt.s32.totalorder %s15, 8
      // Predicated region
      $region17: #{tpu_custom_call.1} parent=5 // pred_check
        %p223 = pneg %p222
      $region18: #{tpu_custom_call.1} parent=5 // pred_check_branch
        %225 = sbr.rel (%p223) target = $region20
      $region19: #{tpu_custom_call.1} parent=5 // pred_region
        // Predicated region
        $region21: #{tpu_custom_call.1} parent=19 // pred_check
          %p226 = pneg %p47
        $region22: #{tpu_custom_call.1} parent=19 // pred_check_branch
          %228 = sbr.rel (%p226) target = $region24
        $region23: #{tpu_custom_call.1} parent=19 // pred_region
          %p229 = scmp.lt.s32.totalorder %s22, 1
          %s230 = scalar_select %p229, %s22, 1
          %s231 = smul.addr %s230, 4
          %s232 = scalar_lea.vmem %s0, %s231
        $region24: #{tpu_custom_call.1} parent=19 // pred_fallthru
          _
        // Predicated region
        $region25: #{tpu_custom_call.1} parent=19 // pred_check
          %p233 = pneg %p73
        $region26: #{tpu_custom_call.1} parent=19 // pred_check_branch
          %235 = sbr.rel (%p233) target = $region28
        $region27: #{tpu_custom_call.1} parent=19 // pred_region
          %p236 = scmp.lt.s32.totalorder %s23, 3
          %s237 = scalar_select %p236, %s23, 3
          %s238 = smul.addr %s237, 4
          %s239 = smul.addr %s238, 4
          %s240 = scalar_lea.vmem %s1, %s239
        $region28: #{tpu_custom_call.1} parent=19 // pred_fallthru
          _
        // Predicated region
        $region29: #{tpu_custom_call.1} parent=19 // pred_check
          %p241 = pneg %p99
        $region30: #{tpu_custom_call.1} parent=19 // pred_check_branch
          %243 = sbr.rel (%p241) target = $region32
        $region31: #{tpu_custom_call.1} parent=19 // pred_region
          %p244 = scmp.lt.s32.totalorder %s23, 3
          %s245 = scalar_select %p244, %s23, 3
          %s246 = smul.addr %s245, 4
          %s247 = smul.addr %s246, 4
          %s248 = scalar_lea.vmem %s2, %s247
        $region32: #{tpu_custom_call.1} parent=19 // pred_fallthru
          _
        // Predicated region
        $region33: #{tpu_custom_call.1} parent=19 // pred_check
          %p249 = pneg %p125
        $region34: #{tpu_custom_call.1} parent=19 // pred_check_branch
          %251 = sbr.rel (%p249) target = $region36
        $region35: #{tpu_custom_call.1} parent=19 // pred_region
          %p252 = scmp.lt.s32.totalorder %s23, 3
          %s253 = scalar_select %p252, %s23, 3
          %s254 = smul.addr %s253, 4
          %s255 = smul.addr %s254, 4
          %s256 = scalar_lea.vmem %s3, %s255
        $region36: #{tpu_custom_call.1} parent=19 // pred_fallthru
          _
        // Predicated region
        $region37: #{tpu_custom_call.1} parent=19 // pred_check
          %p257 = pneg %p151
        $region38: #{tpu_custom_call.1} parent=19 // pred_check_branch
          %259 = sbr.rel (%p257) target = $region40
        $region39: #{tpu_custom_call.1} parent=19 // pred_region
          %p260 = scmp.lt.s32.totalorder %s23, 3
          %s261 = scalar_select %p260, %s23, 3
          %s262 = smul.addr %s261, 4
          %s263 = scalar_lea.vmem %s4, %s262
        $region40: #{tpu_custom_call.1} parent=19 // pred_fallthru
          _
      $region20: #{tpu_custom_call.1} parent=5 // pred_fallthru
        _
      %p264 = scmp.le.s32.totalorder 1, %s15
      %p265 = scmp.lt.s32.totalorder %s15, 9
      %p266 = pnand %p264, %p265
      %p267 = pneg %p266
      // Predicated region
      $region41: #{tpu_custom_call.1} parent=5 // pred_check
        _
      $region42: #{tpu_custom_call.1} parent=5 // pred_check_branch
        %269 = sbr.rel (%p266) target = $region44
      $region43: #{tpu_custom_call.1} parent=5 // pred_region
        %s270 = ssub.s32 %s15, 1
        %p271 = scmp.lt.s32.totalorder %s24, 1
        %s272 = scalar_select %p271, %s24, 1
        %s273 = smul.addr %s272, 4
        %s274 = scalar_lea.vmem %s0, %s273
        %p275 = pneg %p53
        %p276 = pneg %p50
        %p277 = scmp.lt.s32.totalorder %s25, 3
        %s278 = scalar_select %p277, %s25, 3
        %s279 = smul.addr %s278, 4
        %s280 = smul.addr %s279, 4
        %s281 = scalar_lea.vmem %s1, %s280
        %p282 = pneg %p79
        %p283 = pneg %p76
        %p284 = scmp.lt.s32.totalorder %s25, 3
        %s285 = scalar_select %p284, %s25, 3
        %s286 = smul.addr %s285, 4
        %s287 = smul.addr %s286, 4
        %s288 = scalar_lea.vmem %s2, %s287
        %p289 = pneg %p105
        %p290 = pneg %p102
        %p291 = scmp.lt.s32.totalorder %s25, 3
        %s292 = scalar_select %p291, %s25, 3
        %s293 = smul.addr %s292, 4
        %s294 = smul.addr %s293, 4
        %s295 = scalar_lea.vmem %s3, %s294
        %p296 = pneg %p131
        %p297 = pneg %p128
        %p298 = scmp.lt.s32.totalorder %s25, 3
        %s299 = scalar_select %p298, %s25, 3
        %s300 = smul.addr %s299, 4
        %s301 = scalar_lea.vmem %s4, %s300
        %p302 = pneg %p157
        %p303 = pneg %p154
        %p304 = pneg %p178
        %p305 = pneg %p175
        %p306 = pneg %p204
        %p307 = pneg %p201
        %s308 = sand.u32 %s191, 1
        %s309 = scalar_lea.sflag [#allocation4], %s308
        %s310 = sand.u32 %s191, 1
        %s311 = smul.addr %s310, 8
        %s312 = scalar_lea.vmem [#allocation3], %s311
        %p313 = scmp.lt.s32.totalorder %s24, 1
        %s314 = scalar_select %p313, %s24, 1
        %s315 = smul.addr %s314, 4
        %s316 = scalar_lea.vmem %s0, %s315
        %p317 = scmp.lt.s32.totalorder %s25, 3
        %s318 = scalar_select %p317, %s25, 3
        %s319 = smul.addr %s318, 4
        %s320 = smul.addr %s319, 4
        %s321 = scalar_lea.vmem %s1, %s320
        %p322 = scmp.lt.s32.totalorder %s25, 3
        %s323 = scalar_select %p322, %s25, 3
        %s324 = smul.addr %s323, 4
        %s325 = smul.addr %s324, 4
        %s326 = scalar_lea.vmem %s2, %s325
        %p327 = scmp.lt.s32.totalorder %s25, 3
        %s328 = scalar_select %p327, %s25, 3
        %s329 = smul.addr %s328, 4
        %s330 = smul.addr %s329, 4
        %s331 = scalar_lea.vmem %s3, %s330
        %p332 = scmp.lt.s32.totalorder %s25, 3
        %s333 = scalar_select %p332, %s25, 3
        %s334 = smul.addr %s333, 4
        %s335 = scalar_lea.vmem %s4, %s334
        %p337 = scmp.eq.s32.totalorder %s25, 0
        // Predicated region
        $region45: #{tpu_custom_call.1} parent=43 // pred_check
          %p338 = pneg %p337
        $region46: #{tpu_custom_call.1} parent=43 // pred_check_branch
          %340 = sbr.rel (%p338) target = $region48
        $region47: #{tpu_custom_call.1} parent=43 // pred_region
          %vm341 = vcmask 261120
          %342 = vst.msk [vmem:[#allocation2] sm:$0xff] %vm341, 0.0
        $region48: #{tpu_custom_call.1} parent=43 // pred_fallthru
          _
        %v343 = vld [vmem:[%s316] sm:$0xf]
        %v344 = vld [vmem:[%s321] sm:$0xf]
        %v345 = vld [vmem:[%s321 + $0x4] sm:$0xf]
        %v346 = vld [vmem:[%s321 + $0x8] sm:$0xf]
        %v347 = vld [vmem:[%s321 + $0xc] sm:$0xf]
        %v352 = vunpack.c.l.b16 %v344
        %v353 = vunpack.c.l.b16 %v345
        %v354 = vunpack.c.l.b16 %v346
        %v355 = vunpack.c.l.b16 %v347
        %v356 = vpack.c.b16 %v353, %v352
        %v357 = vpack.c.b16 %v355, %v354
        %vm360 = vcmask 261120
        %v362 = vsel %vm360, %v343, 0
        %364 = vmatprep.subr.bf16.mxu0 0
        %365 = vmatpush1.bf16.msra.mxu0 %v356
        %366 = vmatprep.subr.bf16.mxu0 0
        %367 = vmatpush1.bf16.msra.mxu0 %v357
        %368 = vmatprep.subr.bf16.mxu0 0
        %369 = vmatpush1.bf16.msra.mxu0 0
        %370 = vmatprep.subr.bf16.mxu0 0
        %371 = vmatpush1.bf16.msra.mxu0 0
        %372 = vmatprep.subr.bf16.mxu0 0
        %373 = vmatpush1.bf16.msra.mxu0 0
        %374 = vmatprep.subr.bf16.mxu0 0
        %375 = vmatpush1.bf16.msra.mxu0 0
        %376 = vmatprep.subr.bf16.mxu0 0
        %377 = vmatpush1.bf16.msra.mxu0 0
        %378 = vmatprep.subr.bf16.mxu0 0
        %379 = vmatpush1.bf16.msra.mxu0 0
        %380 = vmatprep.subr.bf16.mxu0 0
        %381 = vmatpush1.bf16.msra.mxu0 0
        %382 = vmatprep.subr.bf16.mxu0 0
        %383 = vmatpush1.bf16.msra.mxu0 0
        %384 = vmatprep.subr.bf16.mxu0 0
        %385 = vmatpush1.bf16.msra.mxu0 0
        %386 = vmatprep.subr.bf16.mxu0 0
        %387 = vmatpush1.bf16.msra.mxu0 0
        %388 = vmatprep.subr.bf16.mxu0 0
        %389 = vmatpush1.bf16.msra.mxu0 0
        %390 = vmatprep.subr.bf16.mxu0 0
        %391 = vmatpush1.bf16.msra.mxu0 0
        %392 = vmatprep.subr.bf16.mxu0 0
        %393 = vmatpush1.bf16.msra.mxu0 0
        %394 = vmatprep.subr.bf16.mxu0 0
        %395 = vmatpush1.bf16.msra.mxu0 0
        %396 = vmatprep.mubr.bf16.mxu0 0
        %397 = vmatmul.mubr.bf16.gmra.mrb[0].mxu0 %v362
        %v398 = vpop.f32.mrb[0].mxu0
        %v399 = vadd.f32 0.0, %v398
        %v400 = vpop.f32.mrb[0].mxu0
        %v401 = vpop.f32.mrb[0].mxu0
        %v402 = vpop.f32.mrb[0].mxu0
        %403 = vdwg.mxu0
        %v404 = vld [vmem:[%s326] sm:$0xf]
        %v405 = vld [vmem:[%s326 + $0x4] sm:$0xf]
        %v406 = vld [vmem:[%s326 + $0x8] sm:$0xf]
        %v407 = vld [vmem:[%s326 + $0xc] sm:$0xf]
        %v412 = vunpack.c.l.b16 %v404
        %v413 = vunpack.c.l.b16 %v405
        %v414 = vunpack.c.l.b16 %v406
        %v415 = vunpack.c.l.b16 %v407
        %v416 = vpack.c.b16 %v413, %v412
        %v417 = vpack.c.b16 %v415, %v414
        %420 = vmatprep.subr.bf16.mxu0 0
        %421 = vmatpush1.bf16.msra.mxu0 %v416
        %422 = vmatprep.subr.bf16.mxu0 0
        %423 = vmatpush1.bf16.msra.mxu0 %v417
        %424 = vmatprep.subr.bf16.mxu0 0
        %425 = vmatpush1.bf16.msra.mxu0 0
        %426 = vmatprep.subr.bf16.mxu0 0
        %427 = vmatpush1.bf16.msra.mxu0 0
        %428 = vmatprep.subr.bf16.mxu0 0
        %429 = vmatpush1.bf16.msra.mxu0 0
        %430 = vmatprep.subr.bf16.mxu0 0
        %431 = vmatpush1.bf16.msra.mxu0 0
        %432 = vmatprep.subr.bf16.mxu0 0
        %433 = vmatpush1.bf16.msra.mxu0 0
        %434 = vmatprep.subr.bf16.mxu0 0
        %435 = vmatpush1.bf16.msra.mxu0 0
        %436 = vmatprep.subr.bf16.mxu0 0
        %437 = vmatpush1.bf16.msra.mxu0 0
        %438 = vmatprep.subr.bf16.mxu0 0
        %439 = vmatpush1.bf16.msra.mxu0 0
        %440 = vmatprep.subr.bf16.mxu0 0
        %441 = vmatpush1.bf16.msra.mxu0 0
        %442 = vmatprep.subr.bf16.mxu0 0
        %443 = vmatpush1.bf16.msra.mxu0 0
        %444 = vmatprep.subr.bf16.mxu0 0
        %445 = vmatpush1.bf16.msra.mxu0 0
        %446 = vmatprep.subr.bf16.mxu0 0
        %447 = vmatpush1.bf16.msra.mxu0 0
        %448 = vmatprep.subr.bf16.mxu0 0
        %449 = vmatpush1.bf16.msra.mxu0 0
        %450 = vmatprep.subr.bf16.mxu0 0
        %451 = vmatpush1.bf16.msra.mxu0 0
        %452 = vmatprep.mubr.bf16.mxu0 0
        %453 = vmatmul.mubr.bf16.gmra.mrb[0].mxu0 %v362
        %v454 = vpop.f32.mrb[0].mxu0
        %v455 = vadd.f32 0.0, %v454
        %v456 = vpop.f32.mrb[0].mxu0
        %v457 = vpop.f32.mrb[0].mxu0
        %v458 = vpop.f32.mrb[0].mxu0
        %459 = vdwg.mxu0
        %v460 = vld [vmem:[%s331] sm:$0xf]
        %v461 = vld [vmem:[%s331 + $0x4] sm:$0xf]
        %v462 = vld [vmem:[%s331 + $0x8] sm:$0xf]
        %v463 = vld [vmem:[%s331 + $0xc] sm:$0xf]
        %v468 = vunpack.c.l.b16 %v460
        %v469 = vunpack.c.l.b16 %v461
        %v470 = vunpack.c.l.b16 %v462
        %v471 = vunpack.c.l.b16 %v463
        %v472 = vpack.c.b16 %v469, %v468
        %v473 = vpack.c.b16 %v471, %v470
        %476 = vmatprep.subr.bf16.mxu0 0
        %477 = vmatpush1.bf16.msra.mxu0 %v472
        %478 = vmatprep.subr.bf16.mxu0 0
        %479 = vmatpush1.bf16.msra.mxu0 %v473
        %480 = vmatprep.subr.bf16.mxu0 0
        %481 = vmatpush1.bf16.msra.mxu0 0
        %482 = vmatprep.subr.bf16.mxu0 0
        %483 = vmatpush1.bf16.msra.mxu0 0
        %484 = vmatprep.subr.bf16.mxu0 0
        %485 = vmatpush1.bf16.msra.mxu0 0
        %486 = vmatprep.subr.bf16.mxu0 0
        %487 = vmatpush1.bf16.msra.mxu0 0
        %488 = vmatprep.subr.bf16.mxu0 0
        %489 = vmatpush1.bf16.msra.mxu0 0
        %490 = vmatprep.subr.bf16.mxu0 0
        %491 = vmatpush1.bf16.msra.mxu0 0
        %492 = vmatprep.subr.bf16.mxu0 0
        %493 = vmatpush1.bf16.msra.mxu0 0
        %494 = vmatprep.subr.bf16.mxu0 0
        %495 = vmatpush1.bf16.msra.mxu0 0
        %496 = vmatprep.subr.bf16.mxu0 0
        %497 = vmatpush1.bf16.msra.mxu0 0
        %498 = vmatprep.subr.bf16.mxu0 0
        %499 = vmatpush1.bf16.msra.mxu0 0
        %500 = vmatprep.subr.bf16.mxu0 0
        %501 = vmatpush1.bf16.msra.mxu0 0
        %502 = vmatprep.subr.bf16.mxu0 0
        %503 = vmatpush1.bf16.msra.mxu0 0
        %504 = vmatprep.subr.bf16.mxu0 0
        %505 = vmatpush1.bf16.msra.mxu0 0
        %506 = vmatprep.subr.bf16.mxu0 0
        %507 = vmatpush1.bf16.msra.mxu0 0
        %508 = vmatprep.mubr.bf16.mxu0 0
        %509 = vmatmul.mubr.bf16.gmra.mrb[0].mxu0 %v362
        %v510 = vpop.f32.mrb[0].mxu0
        %v511 = vadd.f32 0.0, %v510
        %v512 = vpop.f32.mrb[0].mxu0
        %v513 = vpop.f32.mrb[0].mxu0
        %v514 = vpop.f32.mrb[0].mxu0
        %515 = vdwg.mxu0
        %v516 = vpack.c.bf16 %v399, %v399
        %v517 = vpack.c.bf16 %v455, %v455
        %vm518 = vcmask 64512
        %v520 = vsel %vm518, %v516, 0
        %v523 = vsel %vm518, %v517, 0
        %525 = vmatprep.subr.bf16.mxu0 0
        %526 = vmatpush1.bf16.xpose.msra.mxu0 %v523
        %527 = vmatprep.subr.bf16.mxu0 0
        %528 = vmatpush1.bf16.xpose.msra.mxu0 0
        %529 = vmatprep.subr.bf16.mxu0 0
        %530 = vmatpush1.bf16.xpose.msra.mxu0 0
        %531 = vmatprep.subr.bf16.mxu0 0
        %532 = vmatpush1.bf16.xpose.msra.mxu0 0
        %533 = vmatprep.subr.bf16.mxu0 0
        %534 = vmatpush1.bf16.xpose.msra.mxu0 0
        %535 = vmatprep.subr.bf16.mxu0 0
        %536 = vmatpush1.bf16.xpose.msra.mxu0 0
        %537 = vmatprep.subr.bf16.mxu0 0
        %538 = vmatpush1.bf16.xpose.msra.mxu0 0
        %539 = vmatprep.subr.bf16.mxu0 0
        %540 = vmatpush1.bf16.xpose.msra.mxu0 0
        %541 = vmatprep.subr.bf16.mxu0 0
        %542 = vmatpush1.bf16.xpose.msra.mxu0 0
        %543 = vmatprep.subr.bf16.mxu0 0
        %544 = vmatpush1.bf16.xpose.msra.mxu0 0
        %545 = vmatprep.subr.bf16.mxu0 0
        %546 = vmatpush1.bf16.xpose.msra.mxu0 0
        %547 = vmatprep.subr.bf16.mxu0 0
        %548 = vmatpush1.bf16.xpose.msra.mxu0 0
        %549 = vmatprep.subr.bf16.mxu0 0
        %550 = vmatpush1.bf16.xpose.msra.mxu0 0
        %551 = vmatprep.subr.bf16.mxu0 0
        %552 = vmatpush1.bf16.xpose.msra.mxu0 0
        %553 = vmatprep.subr.bf16.mxu0 0
        %554 = vmatpush1.bf16.xpose.msra.mxu0 0
        %555 = vmatprep.subr.bf16.mxu0 0
        %556 = vmatpush1.bf16.xpose.msra.mxu0 0
        %557 = vmatprep.mubr.bf16.mxu0 0
        %558 = vmatmul.mubr.bf16.gmra.mrb[0].mxu0 %v520
        %v559 = vpop.f32.mrb[0].mxu0
        %v560 = vadd.f32 0.0, %v559
        %v561 = vpop.f32.mrb[0].mxu0
        %v562 = vpop.f32.mrb[0].mxu0
        %v563 = vpop.f32.mrb[0].mxu0
        %564 = vdwg.mxu0
        %v565 = vsel %vm518, %v560, -inf
        %566 = vmax.xlane.f32.xlu0 %v565
        %v567 = vpop.xlane.xlu0 %566
        %v568 = vsub.f32 %v560, %v567
        %v569 = vmul.f32 %v568, 1.442695
        %v570 = vpow.pop %v569
        %v571 = vsel %vm518, %v570, 0.0
        %572 = vadd.xlane.f32.xlu0 %v571
        %v573 = vpop.xlane.xlu0 %572
        %v574 = vrcp.pop %v573
        %v575 = vmul.f32 %v570, %v574
        %v576 = vpack.c.bf16 %v575, %v575
        %v577 = vpack.c.bf16 %v511, %v511
        %v579 = vsel %vm518, %v576, 0
        %vm581 = vcmask 1043456
        %v583 = vsel %vm581, %v577, 0
        %585 = vmatprep.subr.bf16.mxu0 0
        %586 = vmatpush1.bf16.msra.mxu0 %v583
        %587 = vmatprep.subr.bf16.mxu0 0
        %588 = vmatpush1.bf16.msra.mxu0 0
        %589 = vmatprep.subr.bf16.mxu0 0
        %590 = vmatpush1.bf16.msra.mxu0 0
        %591 = vmatprep.subr.bf16.mxu0 0
        %592 = vmatpush1.bf16.msra.mxu0 0
        %593 = vmatprep.subr.bf16.mxu0 0
        %594 = vmatpush1.bf16.msra.mxu0 0
        %595 = vmatprep.subr.bf16.mxu0 0
        %596 = vmatpush1.bf16.msra.mxu0 0
        %597 = vmatprep.subr.bf16.mxu0 0
        %598 = vmatpush1.bf16.msra.mxu0 0
        %599 = vmatprep.subr.bf16.mxu0 0
        %600 = vmatpush1.bf16.msra.mxu0 0
        %601 = vmatprep.subr.bf16.mxu0 0
        %602 = vmatpush1.bf16.msra.mxu0 0
        %603 = vmatprep.subr.bf16.mxu0 0
        %604 = vmatpush1.bf16.msra.mxu0 0
        %605 = vmatprep.subr.bf16.mxu0 0
        %606 = vmatpush1.bf16.msra.mxu0 0
        %607 = vmatprep.subr.bf16.mxu0 0
        %608 = vmatpush1.bf16.msra.mxu0 0
        %609 = vmatprep.subr.bf16.mxu0 0
        %610 = vmatpush1.bf16.msra.mxu0 0
        %611 = vmatprep.subr.bf16.mxu0 0
        %612 = vmatpush1.bf16.msra.mxu0 0
        %613 = vmatprep.subr.bf16.mxu0 0
        %614 = vmatpush1.bf16.msra.mxu0 0
        %615 = vmatprep.subr.bf16.mxu0 0
        %616 = vmatpush1.bf16.msra.mxu0 0
        %617 = vmatprep.mubr.bf16.mxu0 0
        %618 = vmatmul.mubr.bf16.gmra.mrb[0].mxu0 %v579
        %v619 = vpop.f32.mrb[0].mxu0
        %v620 = vadd.f32 0.0, %v619
        %v621 = vpop.f32.mrb[0].mxu0
        %v622 = vpop.f32.mrb[0].mxu0
        %v623 = vpop.f32.mrb[0].mxu0
        %624 = vdwg.mxu0
        %v625 = vld [vmem:[#allocation2] sm:$0xff]
        %v626 = vpack.c.bf16 %v620, %v620
        %v627 = vld [vmem:[%s335] sm:$0xf]
        %v629 = vsel %vm518, %v626, 0
        %v632 = vsel %vm581, %v627, 0
        %634 = vmatprep.subr.bf16.mxu0 0
        %635 = vmatpush1.bf16.msra.mxu0 %v632
        %636 = vmatprep.subr.bf16.mxu0 0
        %637 = vmatpush1.bf16.msra.mxu0 0
        %638 = vmatprep.subr.bf16.mxu0 0
        %639 = vmatpush1.bf16.msra.mxu0 0
        %640 = vmatprep.subr.bf16.mxu0 0
        %641 = vmatpush1.bf16.msra.mxu0 0
        %642 = vmatprep.subr.bf16.mxu0 0
        %643 = vmatpush1.bf16.msra.mxu0 0
        %644 = vmatprep.subr.bf16.mxu0 0
        %645 = vmatpush1.bf16.msra.mxu0 0
        %646 = vmatprep.subr.bf16.mxu0 0
        %647 = vmatpush1.bf16.msra.mxu0 0
        %648 = vmatprep.subr.bf16.mxu0 0
        %649 = vmatpush1.bf16.msra.mxu0 0
        %650 = vmatprep.subr.bf16.mxu0 0
        %651 = vmatpush1.bf16.msra.mxu0 0
        %652 = vmatprep.subr.bf16.mxu0 0
        %653 = vmatpush1.bf16.msra.mxu0 0
        %654 = vmatprep.subr.bf16.mxu0 0
        %655 = vmatpush1.bf16.msra.mxu0 0
        %656 = vmatprep.subr.bf16.mxu0 0
        %657 = vmatpush1.bf16.msra.mxu0 0
        %658 = vmatprep.subr.bf16.mxu0 0
        %659 = vmatpush1.bf16.msra.mxu0 0
        %660 = vmatprep.subr.bf16.mxu0 0
        %661 = vmatpush1.bf16.msra.mxu0 0
        %662 = vmatprep.subr.bf16.mxu0 0
        %663 = vmatpush1.bf16.msra.mxu0 0
        %664 = vmatprep.subr.bf16.mxu0 0
        %665 = vmatpush1.bf16.msra.mxu0 0
        %666 = vmatprep.mubr.bf16.mxu0 0
        %667 = vmatmul.mubr.bf16.gmra.mrb[0].mxu0 %v629
        %v668 = vpop.f32.mrb[0].mxu0
        %v669 = vadd.f32 0.0, %v668
        %v670 = vpop.f32.mrb[0].mxu0
        %v671 = vpop.f32.mrb[0].mxu0
        %v672 = vpop.f32.mrb[0].mxu0
        %673 = vdwg.mxu0
        %v674 = vadd.f32 %v625, %v669
        %675 = vst.msk [vmem:[#allocation2] sm:$0xff] %vm360, %v674
        %p676 = scmp.eq.s32.totalorder %s25, 3
        // Predicated region
        $region49: #{tpu_custom_call.1} parent=43 // pred_check
          %p677 = pneg %p676
        $region50: #{tpu_custom_call.1} parent=43 // pred_check_branch
          %679 = sbr.rel (%p677) target = $region52
        $region51: #{tpu_custom_call.1} parent=43 // pred_region
          %v680 = vld [vmem:[#allocation2] sm:$0xff]
          %v681 = vld [vmem:[%s5] sm:$0x1]
          %v683 = vlaneseq
          %v684 = vshrl.u32 %v683, 7
          %v685 = vsub.s32 0, %v684
          %v686 = vrot.slane %v681, %v685
          %v688 = vadd.f32 %v680, %v686
          %689 = vst.msk [vmem:[%s312] sm:$0xff] %vm360, %v688
        $region52: #{tpu_custom_call.1} parent=43 // pred_fallthru
          _
        %s690 = sand.u32 %s191, 1
        %s691 = scalar_lea.sflag [#allocation4], %s690
        %s692 = sand.u32 %s191, 1
        %s693 = smul.addr %s692, 8
        %s694 = scalar_lea.vmem [#allocation3], %s693
        // Predicated region
        $region53: #{tpu_custom_call.1} parent=43 // pred_check
          %p695 = pneg %p201
        $region54: #{tpu_custom_call.1} parent=43 // pred_check_branch
          %697 = sbr.rel (%p695) target = $region56
        $region55: #{tpu_custom_call.1} parent=43 // pred_region
          %s699 = ssub.s32 128, 128
          %700 = vsyncadd %s691, %s699
          %s701 = smul.addr %s24, 128
          %s702 = scalar_lea.hbm %s6, %s701
          %s704 = sshll.u32 %s694, 4
          %s705 = int_to_ptr.vmem [resolvable:$true] %s704
          %707 = dma.vmem_to_hbm [thread:$0]  %s705, 128, %s702, %s691
        $region56: #{tpu_custom_call.1} parent=43 // pred_fallthru
          _
      $region44: #{tpu_custom_call.1} parent=5 // pred_fallthru
        _
      %p708 = scmp.le.s32.totalorder 2, %s15
      // Predicated region
      $region57: #{tpu_custom_call.1} parent=5 // pred_check
        %p709 = pneg %p708
      $region58: #{tpu_custom_call.1} parent=5 // pred_check_branch
        %711 = sbr.rel (%p709) target = $region60
      $region59: #{tpu_custom_call.1} parent=5 // pred_region
        %s712 = ssub.s32 %s15, 2
        // Predicated region
        $region61: #{tpu_custom_call.1} parent=59 // pred_check
          %p713 = pneg %p207
        $region62: #{tpu_custom_call.1} parent=59 // pred_check_branch
          %715 = sbr.rel (%p713) target = $region64
        $region63: #{tpu_custom_call.1} parent=59 // pred_region
          %s716 = sand.u32 %s192, 1
          %s717 = scalar_lea.sflag [#allocation4], %s716
          %s718 = sand.u32 %s192, 1
          %s719 = smul.addr %s718, 8
          %s720 = scalar_lea.vmem [#allocation3], %s719
          %721 = dma.done %s717, 128
        $region64: #{tpu_custom_call.1} parent=59 // pred_fallthru
          _
      $region60: #{tpu_custom_call.1} parent=5 // pred_fallthru
        _
    $region6: #{tpu_custom_call.1} parent=1 // loop_footer
      %s19 = sadd.s32 1, %s15
    $region7: #{tpu_custom_call.1} parent=1 // loop_footer_branch
      %14 = sbr.rel target = $region3
    $region8: #{tpu_custom_call.1} parent=1 // loop_exit
      _
    %722 = vsyncpa [#allocation4], 1
    %s723 = scalar_lea.sflag [#allocation4], 1
    %724 = vsyncpa %s723, 1

</llo_original>
